<compile_context>
chip_gen: v5e
topology: v5e:2x2
jax: 0.10.0
libtpu: 0.0.40
codegen_flags: <defaults>
</compile_context>

<pallas_src>
import functools

import jax
import jax.numpy as jnp
from jax.experimental import pallas as pl
from jax.experimental.pallas import tpu as pltpu


def _znorm_kernel(x_ref, o_ref, mx_sc, sm_sc, *, inv_d, dt, d_valid, masked):
    """One grid step: accumulate channel max / f32 sum for one spatial tile.

    x_ref : (1, dt, rt, 128) input block (VMEM)
    o_ref : (1, 2, rt, 128)  output block (VMEM), written on the last d step
    mx_sc, sm_sc : (rt, 128) float32 scratch accumulators
    """
    d_idx = pl.program_id(2)

    @pl.when(d_idx == 0)
    def _init():
        mx_sc[...] = jnp.full_like(mx_sc, -jnp.inf)
        sm_sc[...] = jnp.zeros_like(sm_sc)

    def step(j, carry):
        mx, sm = carry
        xd = x_ref[0, j].astype(jnp.float32)
        if masked:
            # Ragged last channel tile (padded channels): skip padded slabs.
            ok = (d_idx * dt + j) < d_valid
            return (jnp.where(ok, jnp.maximum(mx, xd), mx),
                    jnp.where(ok, sm + xd, sm))
        return jnp.maximum(mx, xd), sm + xd

    carry = (mx_sc[...], sm_sc[...])
    if dt <= 16:
        # Short compile-time channel count: fully unroll with static indices.
        for j in range(dt):
            carry = step(j, carry)
    else:
        carry = jax.lax.fori_loop(0, dt, step, carry, unroll=8)
    mx_sc[...], sm_sc[...] = carry

    @pl.when(d_idx == pl.num_programs(2) - 1)
    def _finalize():
        o_ref[0, 0] = mx_sc[...].astype(o_ref.dtype)
        o_ref[0, 1] = (sm_sc[...] * inv_d).astype(o_ref.dtype)


def _cdiv(a, b):
    return -(-a // b)


def _round_up(a, b):
    return _cdiv(a, b) * b


def _choose_tiles(R, D, itemsize, n_batch,
                  budget_bytes=24 * 1024 * 1024, max_rows=4096):
    """Pick (rt, n_spatial_tiles, dt, n_channel_tiles)."""
    # Dtype-aware sublane granularity: f32 -> 8, bf16 -> 16, int8/fp8 -> 32.
    gran = max(8, 32 // max(int(itemsize), 1))

    def rows_for(dt):
        # Per-row VMEM: double-buffered in (dt) + out (2) blocks + 2 f32 scratch.
        per_row = 2 * (dt + 2) * 128 * itemsize + 2 * 128 * 4
        return budget_bytes // per_row

    # First try taking all channels in a single block.
    dt, n_d = D, 1
    rows = min(rows_for(D), max_rows)
    if rows < gran:
        # Channel axis too deep for one budget-sized block: tile it instead
        # ("arbitrary" grid axis with scratch accumulators).
        rows = gran
        dt = max(1, (budget_bytes // gran - 2 * 128 * 4)
                 // (2 * 128 * itemsize) - 2)
        n_d = _cdiv(D, dt)
        dt = _cdiv(D, n_d)  # balance channel tiles

    if R <= rows:
        rt, n_sp = R, 1              # full-extent block is legal for any R
    else:
        rt = (rows // gran) * gran
        n_sp = _cdiv(R, rt)
        # Shrink rt while the ragged-last-tile padding would exceed ~1/8 waste.
        while rt > gran and (n_sp * rt - R) * 8 > R:
            rt -= gran
            n_sp = _cdiv(R, rt)

    # Keep both v7x TensorCores busy when the batch axis alone can't.
    if n_batch % 2 == 1 and n_sp == 1 and R > gran:
        rt = _round_up(_cdiv(R, 2), gran)
        n_sp = _cdiv(R, rt)

    return rt, n_sp, dt, n_d


def znorm(x):
    """x: (N, D, X, Y) -> (N, 2, X, Y); per-location channel max & mean."""
    N, D, X, Y = x.shape
    S = X * Y
    itemsize = jnp.dtype(x.dtype).itemsize
    L = 128
    R = _cdiv(S, L)

    rt, n_sp, dt, n_d = _choose_tiles(R, D, itemsize, N)
    Rp = rt * n_sp
    Dp = dt * n_d

    xr = x.reshape(N, D, S)
    pad_s = Rp * L - S
    pad_d = Dp - D
    if pad_s or pad_d:
        # Padding is layout plumbing: padded spatial rows are cropped from the
        # output; padded channels (rare, huge-D case) are masked in-kernel.
        xr = jnp.pad(xr, ((0, 0), (0, pad_d), (0, pad_s)))
    xr = xr.reshape(N, Dp, Rp, L)

    kernel = functools.partial(_znorm_kernel, inv_d=1.0 / D, dt=dt,
                               d_valid=D, masked=(Dp != D))

    out = pl.pallas_call(
        kernel,
        out_shape=jax.ShapeDtypeStruct((N, 2, Rp, L), x.dtype),
        grid_spec=pltpu.PrefetchScalarGridSpec(
            num_scalar_prefetch=0,
            grid=(N, n_sp, n_d),
            in_specs=[
                pl.BlockSpec((1, dt, rt, L), lambda n, r, d: (n, d, r, 0)),
            ],
            out_specs=pl.BlockSpec((1, 2, rt, L), lambda n, r, d: (n, 0, r, 0)),
            scratch_shapes=[
                pltpu.VMEM((rt, L), jnp.float32),   # running max
                pltpu.VMEM((rt, L), jnp.float32),   # running sum
            ],
        ),
        compiler_params=pltpu.CompilerParams(
            dimension_semantics=("parallel", "parallel", "arbitrary"),
            vmem_limit_bytes=32 * 1024 * 1024,
        ),
    )(xr)

    out = out.reshape(N, 2, Rp * L)[:, :, :S].reshape(N, 2, X, Y)
    return out


def znorm_ref(x):
    """Pure-JAX reference matching the PyTorch module."""
    mx = jnp.max(x, axis=1, keepdims=True)
    av = jnp.mean(x, axis=1, keepdims=True)
    return jnp.concatenate([mx, av], axis=1)


if __name__ == "__main__":
    key = jax.random.PRNGKey(0)

    # Primary shape implied by the module.
    x = jax.random.normal(key, (2, 4, 16, 16), dtype=jnp.float32)
    out = znorm(x)
    jax.block_until_ready(out)
    assert out.shape == (2, 2, 16, 16)
    assert jnp.allclose(out, znorm_ref(x), atol=1e-5, rtol=1e-5)

    # Non-128-multiple spatial extent -> lane padding + crop path.
    x2 = jax.random.normal(jax.random.PRNGKey(1), (2, 4, 10, 10),
                           dtype=jnp.float32)
    assert jnp.allclose(znorm(x2), znorm_ref(x2), atol=1e-5, rtol=1e-5)

    # Odd batch + multi-row spatial -> dual-TC spatial split + row padding.
    x3 = jax.random.normal(jax.random.PRNGKey(2), (1, 8, 64, 40),
                           dtype=jnp.float32)
    assert jnp.allclose(znorm(x3), znorm_ref(x3), atol=1e-5, rtol=1e-5)

    # Deeper channel count -> streamed fori_loop reduction path.
    x4 = jax.random.normal(jax.random.PRNGKey(3), (1, 32, 16, 16),
                           dtype=jnp.float32)
    assert jnp.allclose(znorm(x4), znorm_ref(x4), atol=1e-5, rtol=1e-5)

    # bf16 activations -> 16-row sublane granularity, f32 accumulation.
    x5 = jax.random.normal(jax.random.PRNGKey(4),
                           (2, 4, 16, 16)).astype(jnp.bfloat16)
    o5 = znorm(x5).astype(jnp.float32)
    r5 = znorm_ref(x5.astype(jnp.float32))
    assert jnp.allclose(o5, r5, atol=2e-2, rtol=2e-2)

    print("KERNEL_OK")
</pallas_src>

<mosaic_0001>
module attributes {stable_mosaic.version = 11 : i64} {
  func.func @_znorm_kernel(%arg0: i32, %arg1: i32, %arg2: i32, %arg3: memref<1x4x2x128xf32, #tpu.memory_space<vmem>>, %arg4: memref<1x2x2x128xf32, #tpu.memory_space<vmem>>, %arg5: memref<2x128xf32, #tpu.memory_space<vmem>>, %arg6: memref<2x128xf32, #tpu.memory_space<vmem>>) attributes {dimension_semantics = [#tpu.dimension_semantics<parallel>, #tpu.dimension_semantics<parallel>, #tpu.dimension_semantics<arbitrary>], iteration_bounds = array<i64: 2, 1, 1>, scalar_prefetch = 0 : i64, scratch_operands = 2 : i64, tpu.core_type = #tpu.core_type<tc>, window_params = [{transform_indices = @transform_0, window_bounds = array<i64: 1, 4, 2, 128>}, {transform_indices = @transform_1, window_bounds = array<i64: 1, 2, 2, 128>}]} {
    %c0_i32 = arith.constant 0 : i32
    %0 = arith.cmpi eq, %arg2, %c0_i32 : i32
    %1 = arith.extui %0 : i1 to i32
    %c0_i32_0 = arith.constant 0 : i32
    %2 = arith.cmpi ne, %1, %c0_i32_0 : i32
    scf.if %2 {
      %cst = arith.constant 0xFF800000 : f32
      %26 = vector.broadcast %cst : f32 to vector<2x128xf32>
      %c0_23 = arith.constant 0 : index
      %c0_24 = arith.constant 0 : index
      %27 = vector.load %arg5[%c0_23, %c0_24] : memref<2x128xf32, #tpu.memory_space<vmem>>, vector<2x128xf32>
      tpu.vector_store %arg5[%c0_23, %c0_24], %26 {strides = array<i32>} : memref<2x128xf32, #tpu.memory_space<vmem>>, vector<2x128xf32>,
      %cst_25 = arith.constant 0.000000e+00 : f32
      %28 = vector.broadcast %cst_25 : f32 to vector<2x128xf32>
      %c0_26 = arith.constant 0 : index
      %c0_27 = arith.constant 0 : index
      %29 = vector.load %arg6[%c0_26, %c0_27] : memref<2x128xf32, #tpu.memory_space<vmem>>, vector<2x128xf32>
      tpu.vector_store %arg6[%c0_26, %c0_27], %28 {strides = array<i32>} : memref<2x128xf32, #tpu.memory_space<vmem>>, vector<2x128xf32>,
    } else {
    }
    %c0 = arith.constant 0 : index
    %c0_1 = arith.constant 0 : index
    %3 = vector.load %arg5[%c0, %c0_1] : memref<2x128xf32, #tpu.memory_space<vmem>>, vector<2x128xf32>
    %c0_2 = arith.constant 0 : index
    %c0_3 = arith.constant 0 : index
    %4 = vector.load %arg6[%c0_2, %c0_3] : memref<2x128xf32, #tpu.memory_space<vmem>>, vector<2x128xf32>
    %c0_4 = arith.constant 0 : index
    %c0_5 = arith.constant 0 : index
    %c0_6 = arith.constant 0 : index
    %c0_7 = arith.constant 0 : index
    %5 = vector.load %arg3[%c0_4, %c0_5, %c0_6, %c0_7] : memref<1x4x2x128xf32, #tpu.memory_space<vmem>>, vector<1x1x2x128xf32>
    %6 = vector.shape_cast %5 : vector<1x1x2x128xf32> to vector<2x128xf32>
    %7 = arith.maximumf %3, %6 : vector<2x128xf32>
    %8 = arith.addf %4, %6 : vector<2x128xf32>
    %c0_8 = arith.constant 0 : index
    %c1 = arith.constant 1 : index
    %c0_9 = arith.constant 0 : index
    %c0_10 = arith.constant 0 : index
    %9 = vector.load %arg3[%c0_8, %c1, %c0_9, %c0_10] : memref<1x4x2x128xf32, #tpu.memory_space<vmem>>, vector<1x1x2x128xf32>
    %10 = vector.shape_cast %9 : vector<1x1x2x128xf32> to vector<2x128xf32>
    %11 = arith.maximumf %7, %10 : vector<2x128xf32>
    %12 = arith.addf %8, %10 : vector<2x128xf32>
    %c0_11 = arith.constant 0 : index
    %c2 = arith.constant 2 : index
    %c0_12 = arith.constant 0 : index
    %c0_13 = arith.constant 0 : index
    %13 = vector.load %arg3[%c0_11, %c2, %c0_12, %c0_13] : memref<1x4x2x128xf32, #tpu.memory_space<vmem>>, vector<1x1x2x128xf32>
    %14 = vector.shape_cast %13 : vector<1x1x2x128xf32> to vector<2x128xf32>
    %15 = arith.maximumf %11, %14 : vector<2x128xf32>
    %16 = arith.addf %12, %14 : vector<2x128xf32>
    %c0_14 = arith.constant 0 : index
    %c3 = arith.constant 3 : index
    %c0_15 = arith.constant 0 : index
    %c0_16 = arith.constant 0 : index
    %17 = vector.load %arg3[%c0_14, %c3, %c0_15, %c0_16] : memref<1x4x2x128xf32, #tpu.memory_space<vmem>>, vector<1x1x2x128xf32>
    %18 = vector.shape_cast %17 : vector<1x1x2x128xf32> to vector<2x128xf32>
    %19 = arith.maximumf %15, %18 : vector<2x128xf32>
    %20 = arith.addf %16, %18 : vector<2x128xf32>
    %c0_17 = arith.constant 0 : index
    %c0_18 = arith.constant 0 : index
    %21 = vector.load %arg5[%c0_17, %c0_18] : memref<2x128xf32, #tpu.memory_space<vmem>>, vector<2x128xf32>
    tpu.vector_store %arg5[%c0_17, %c0_18], %19 {strides = array<i32>} : memref<2x128xf32, #tpu.memory_space<vmem>>, vector<2x128xf32>,
    %c0_19 = arith.constant 0 : index
    %c0_20 = arith.constant 0 : index
    %22 = vector.load %arg6[%c0_19, %c0_20] : memref<2x128xf32, #tpu.memory_space<vmem>>, vector<2x128xf32>
    tpu.vector_store %arg6[%c0_19, %c0_20], %20 {strides = array<i32>} : memref<2x128xf32, #tpu.memory_space<vmem>>, vector<2x128xf32>,
    %c0_i32_21 = arith.constant 0 : i32
    %23 = arith.cmpi eq, %arg2, %c0_i32_21 : i32
    %24 = arith.extui %23 : i1 to i32
    %c0_i32_22 = arith.constant 0 : i32
    %25 = arith.cmpi ne, %24, %c0_i32_22 : i32
    scf.if %25 {
      %c0_23 = arith.constant 0 : index
      %c0_24 = arith.constant 0 : index
      %26 = vector.load %arg5[%c0_23, %c0_24] : memref<2x128xf32, #tpu.memory_space<vmem>>, vector<2x128xf32>
      %c0_25 = arith.constant 0 : index
      %c0_26 = arith.constant 0 : index
      %c0_27 = arith.constant 0 : index
      %c0_28 = arith.constant 0 : index
      %27 = vector.load %arg4[%c0_25, %c0_26, %c0_27, %c0_28] : memref<1x2x2x128xf32, #tpu.memory_space<vmem>>, vector<1x1x2x128xf32>
      %28 = vector.shape_cast %27 : vector<1x1x2x128xf32> to vector<2x128xf32>
      %29 = vector.shape_cast %26 : vector<2x128xf32> to vector<1x1x2x128xf32>
      tpu.vector_store %arg4[%c0_25, %c0_26, %c0_27, %c0_28], %29 {strides = array<i32>} : memref<1x2x2x128xf32, #tpu.memory_space<vmem>>, vector<1x1x2x128xf32>,
      %c0_29 = arith.constant 0 : index
      %c0_30 = arith.constant 0 : index
      %30 = vector.load %arg6[%c0_29, %c0_30] : memref<2x128xf32, #tpu.memory_space<vmem>>, vector<2x128xf32>
      %cst = arith.constant 2.500000e-01 : f32
      %31 = vector.broadcast %cst : f32 to vector<2x128xf32>
      %32 = arith.mulf %30, %31 : vector<2x128xf32>
      %c0_31 = arith.constant 0 : index
      %c1_32 = arith.constant 1 : index
      %c0_33 = arith.constant 0 : index
      %c0_34 = arith.constant 0 : index
      %33 = vector.load %arg4[%c0_31, %c1_32, %c0_33, %c0_34] : memref<1x2x2x128xf32, #tpu.memory_space<vmem>>, vector<1x1x2x128xf32>
      %34 = vector.shape_cast %33 : vector<1x1x2x128xf32> to vector<2x128xf32>
      %35 = vector.shape_cast %32 : vector<2x128xf32> to vector<1x1x2x128xf32>
      tpu.vector_store %arg4[%c0_31, %c1_32, %c0_33, %c0_34], %35 {strides = array<i32>} : memref<1x2x2x128xf32, #tpu.memory_space<vmem>>, vector<1x1x2x128xf32>,
    } else {
    }
    return
  }
  func.func @transform_0(%arg0: i32, %arg1: i32, %arg2: i32) -> (i32, i32, i32, i32) {
    %c0_i32 = arith.constant 0 : i32
    %c0_i32_0 = arith.constant 0 : i32
    return %arg0, %arg2, %arg1, %c0_i32 : i32, i32, i32, i32
  }
  func.func @transform_1(%arg0: i32, %arg1: i32, %arg2: i32) -> (i32, i32, i32, i32) {
    %c0_i32 = arith.constant 0 : i32
    %c0_i32_0 = arith.constant 0 : i32
    %c0_i32_1 = arith.constant 0 : i32
    return %arg0, %c0_i32, %arg1, %c0_i32_0 : i32, i32, i32, i32
  }
}

</mosaic_0001>

<llo_original>
// kernel: tpu_custom_call.1
$region0: #{tpu_custom_call.1}
  #allocation0 [shape = 'u32[]', space=smem, size = 0x4, offset = 0x4, fixed_abs, tag = 'smem constant byte address 0x4 - core index']
  #allocation1 [shape = 'u32[72,128]{1,0:T(1,128)}', space=vmem, size = 0x9000, scoped, tag = 'internal scratch']
  #allocation2 [shape = 'f32[2,128]{1,0:T(2,128)}', space=vmem, size = 0x400, scoped, tag = 'scratch operand']
  #allocation3 [shape = 'f32[2,128]{1,0:T(2,128)}', space=vmem, size = 0x400, scoped, tag = 'scratch operand']
  %s0 = inlined_call_operand.hbm [shape: f32[2,4,2,128], index: 0, kind: input, shape index: {}]
  %s1 = inlined_call_operand.hbm [shape: f32[2,2,2,128], index: 1, kind: output, shape index: {}]
  %s2 = sld [smem:[#allocation0]]
  $region49: #{tpu_custom_call.1} parent=0
    _
  %s4 = ssub.s32 1, %s2
  %s5 = scalar_select 0, %s4, %s2
  $region1: #{tpu_custom_call.1} parent=0
    #allocation4 [shape = 'u8[8192]{0}', space=vmem, size = 0x2000, scoped, tag = 'input window, operand 0']
    #allocation5 [shape = 's32[2]{0}', space=sflag, size = 0x8, scoped, tag = 'scoped memory for tpu_custom_call.1']
    #allocation6 [shape = 's32[2]{0}', space=sflag, size = 0x8, scoped, tag = 'scoped memory for tpu_custom_call.1']
    #allocation7 [shape = 'u8[4096]{0}', space=vmem, size = 0x1000, scoped, tag = 'output window, operand 0']
    %6 = vsyncpa [#allocation5], 0
    %s7 = scalar_lea.sflag [#allocation5], 1
    %8 = vsyncpa %s7, 0
    %9 = vsyncpa [#allocation6], 0
    %s10 = scalar_lea.sflag [#allocation6], 1
    %11 = vsyncpa %s10, 0
    loop: start=0, step=1, limit=4
    $region2: #{tpu_custom_call.1} parent=1 // loop_pre_header
      _
    $region3: #{tpu_custom_call.1} parent=1 // loop_header
      %s13 = sphi 0, %s17
      %p14 = scmp.ge.s32.totalorder %s13, 4
      %s20 = sphi 0, %s39
      %s21 = sphi 0, %s35
      %s22 = sphi 0, %s31
      %s23 = sphi 0, %s20
      %s24 = sphi 0, %s21
      %s25 = sphi 0, %s22
      %s26 = sphi 0, %s23
      %s27 = sphi 0, %s24
      %s28 = sphi 0, %s25
      %s46 = sphi 0, %s48
      %s49 = sphi 0, %s46
      %s50 = sphi 0, %s49
      %s66 = sphi 0, %s50
      %s74 = sphi 0, %s76
      %s77 = sphi 0, %s74
      %s78 = sphi 0, %s77
      %s94 = sphi 0, %s78
    $region4: #{tpu_custom_call.1} parent=1 // loop_header_branch
      %16 = sbr.rel (%p14) target = $region8
    $region5: #{tpu_custom_call.1} parent=1 // loop_body
      %s18 = ssub.s32 %s13, 1
      %s19 = ssub.s32 %s13, 2
      %s29 = sadd.s32 1, %s22
      %p30 = scmp.ge.s32.totalorder %s29, 1
      %s31 = scalar_select %p30, 0, %s29
      %s32 = sadd.s32 1, %s21
      %s33 = scalar_select %p30, %s32, %s21
      %p34 = scmp.ge.s32.totalorder %s33, 1
      %s35 = scalar_select %p34, 0, %s33
      %s36 = sadd.s32 1, %s20
      %s37 = scalar_select %p34, %s36, %s20
      %p38 = scmp.ge.s32.totalorder %s37, 2
      %s39 = scalar_select %p38, 0, %s37
      %s40 = ssub.s32 %s20, %s39
      %s41 = ssub.s32 %s22, %s31
      %s42 = sor.u32 %s40, %s41
      %s43 = ssub.s32 %s21, %s35
      %s44 = sor.u32 %s42, %s43
      %p45 = scmp.eq.s32.totalorder %s44, 0
      %s47 = sadd.s32 %s46, 1
      %s48 = scalar_select %p45, %s46, %s47
      %p51 = pneg %p45
      %p52 = scmp.eq.s32.totalorder %s13, 1
      %p53 = por %p51, %p52
      %p54 = scmp.ne.s32.totalorder %s46, %s49
      %p55 = scmp.eq.s32.totalorder %s13, 0
      %p56 = por %p54, %p55
      %p57 = scmp.ne.s32.totalorder %s46, %s49
      %p58 = scmp.eq.s32.totalorder %s18, 1
      %p59 = por %p57, %p58
      %p60 = scmp.ne.s32.totalorder %s49, %s50
      %p61 = scmp.eq.s32.totalorder %s18, 0
      %p62 = por %p60, %p61
      %p63 = scmp.ne.s32.totalorder %s49, %s50
      %p64 = scmp.eq.s32.totalorder %s19, 1
      %p65 = por %p63, %p64
      %p67 = scmp.ne.s32.totalorder %s50, %s66
      %p68 = scmp.eq.s32.totalorder %s19, 0
      %p69 = por %p67, %p68
      %s70 = ssub.s32 %s20, %s39
      %s71 = ssub.s32 %s21, %s35
      %s72 = sor.u32 %s70, %s71
      %p73 = scmp.eq.s32.totalorder %s72, 0
      %s75 = sadd.s32 %s74, 1
      %s76 = scalar_select %p73, %s74, %s75
      %p79 = pneg %p73
      %p80 = scmp.eq.s32.totalorder %s13, 1
      %p81 = por %p79, %p80
      %p82 = scmp.ne.s32.totalorder %s74, %s77
      %p83 = scmp.eq.s32.totalorder %s13, 0
      %p84 = por %p82, %p83
      %p85 = scmp.ne.s32.totalorder %s74, %s77
      %p86 = scmp.eq.s32.totalorder %s18, 1
      %p87 = por %p85, %p86
      %p88 = scmp.ne.s32.totalorder %s77, %s78
      %p89 = scmp.eq.s32.totalorder %s18, 0
      %p90 = por %p88, %p89
      %p91 = scmp.ne.s32.totalorder %s77, %s78
      %p92 = scmp.eq.s32.totalorder %s19, 1
      %p93 = por %p91, %p92
      %p95 = scmp.ne.s32.totalorder %s78, %s94
      %p96 = scmp.eq.s32.totalorder %s19, 0
      %p97 = por %p95, %p96
      %p98 = scmp.le.s32.totalorder 1, %s13
      %p99 = scmp.lt.s32.totalorder %s13, 3
      %p100 = pnand %p98, %p99
      %p101 = pneg %p100
      // Predicated region
      $region9: #{tpu_custom_call.1} parent=5 // pred_check
        _
      $region10: #{tpu_custom_call.1} parent=5 // pred_check_branch
        %103 = sbr.rel (%p100) target = $region12
      $region11: #{tpu_custom_call.1} parent=5 // pred_region
        %s104 = ssub.s32 %s13, 1
      $region12: #{tpu_custom_call.1} parent=5 // pred_fallthru
        _
      %p105 = scmp.lt.s32.totalorder %s13, 2
      // Predicated region
      $region13: #{tpu_custom_call.1} parent=5 // pred_check
        %p106 = pneg %p105
      $region14: #{tpu_custom_call.1} parent=5 // pred_check_branch
        %108 = sbr.rel (%p106) target = $region16
      $region15: #{tpu_custom_call.1} parent=5 // pred_region
        // Predicated region
        $region17: #{tpu_custom_call.1} parent=15 // pred_check
          %p109 = pneg %p56
        $region18: #{tpu_custom_call.1} parent=15 // pred_check_branch
          %111 = sbr.rel (%p109) target = $region20
        $region19: #{tpu_custom_call.1} parent=15 // pred_region
          %s112 = sand.u32 %s46, 1
          %s113 = scalar_lea.sflag [#allocation5], %s112
          %s114 = sand.u32 %s46, 1
          %s115 = smul.addr %s114, 8
          %s116 = scalar_lea.vmem [#allocation4], %s115
          %s117 = smul.u32 4, %s22
          %119 = vsyncadd %s113, 0
          %s120 = sadd.s32 %s21, %s117
          %s121 = smul.addr %s20, 4
          %s122 = sadd.s32 %s120, %s121
          %s123 = smul.addr %s122, 2
          %s124 = scalar_lea.hbm %s0, %s123
          %s125 = sshll.u32 %s124, 4
          %s126 = int_to_ptr.hbm [resolvable:$true] %s125
          %s127 = sshll.u32 %s116, 4
          %s128 = int_to_ptr.vmem [resolvable:$true] %s127
          %133 = dma.hbm_to_vmem [thread:$0]  %s126, 128, %s128, %s113, 32, 32, 2
        $region20: #{tpu_custom_call.1} parent=15 // pred_fallthru
          _
      $region16: #{tpu_custom_call.1} parent=5 // pred_fallthru
        _
      %p134 = scmp.le.s32.totalorder 1, %s13
      %p135 = scmp.lt.s32.totalorder %s13, 3
      %p136 = pnand %p134, %p135
      %p137 = pneg %p136
      // Predicated region
      $region21: #{tpu_custom_call.1} parent=5 // pred_check
        _
      $region22: #{tpu_custom_call.1} parent=5 // pred_check_branch
        %139 = sbr.rel (%p136) target = $region24
      $region23: #{tpu_custom_call.1} parent=5 // pred_region
        %s140 = ssub.s32 %s13, 1
        %s141 = sand.u32 %s49, 1
        %s142 = scalar_lea.sflag [#allocation5], %s141
        %s143 = sand.u32 %s49, 1
        %s144 = smul.addr %s143, 8
        %s145 = scalar_lea.vmem [#allocation4], %s144
        // Predicated region
        $region25: #{tpu_custom_call.1} parent=23 // pred_check
          %p146 = pneg %p62
        $region26: #{tpu_custom_call.1} parent=23 // pred_check_branch
          %148 = sbr.rel (%p146) target = $region28
        $region27: #{tpu_custom_call.1} parent=23 // pred_region
          %150 = dma.done %s142, 128
        $region28: #{tpu_custom_call.1} parent=23 // pred_fallthru
          _
        %s151 = sand.u32 %s49, 1
        %s152 = scalar_lea.sflag [#allocation5], %s151
        %s153 = sand.u32 %s49, 1
        %s154 = smul.addr %s153, 8
        %s155 = scalar_lea.vmem [#allocation4], %s154
        %p156 = pneg %p62
        %p157 = pneg %p59
        %p158 = pneg %p90
        %p159 = pneg %p87
        %s160 = sand.u32 %s77, 1
        %s161 = scalar_lea.sflag [#allocation6], %s160
        %s162 = sand.u32 %s77, 1
        %s163 = smul.addr %s162, 4
        %s164 = scalar_lea.vmem [#allocation7], %s163
        %s165 = smul.u32 4, %s25
        %p166 = scmp.eq.s32.totalorder %s25, 0
        // Predicated region
        $region29: #{tpu_custom_call.1} parent=23 // pred_check
          %p167 = pneg %p166
        $region30: #{tpu_custom_call.1} parent=23 // pred_check_branch
          %169 = sbr.rel (%p167) target = $region32
        $region31: #{tpu_custom_call.1} parent=23 // pred_region
          %170 = vst [vmem:[#allocation2] sm:$0x3] -inf
          %171 = vst [vmem:[#allocation3] sm:$0x3] 0.0
        $region32: #{tpu_custom_call.1} parent=23 // pred_fallthru
          _
        %v172 = vld [vmem:[#allocation2] sm:$0x3]
        %v173 = vld [vmem:[#allocation3] sm:$0x3]
        %v174 = vld [vmem:[%s145] sm:$0x3]
        %v175 = vmax.f32 %v172, %v174
        %v176 = vadd.f32 %v173, %v174
        %s177 = scalar_lea.vmem %s145, 2 [#allocation4]
        %v178 = vld [vmem:[%s177] sm:$0x3]
        %v179 = vmax.f32 %v175, %v178
        %v180 = vadd.f32 %v176, %v178
        %s181 = scalar_lea.vmem %s145, 4 [#allocation4]
        %v182 = vld [vmem:[%s181] sm:$0x3]
        %v183 = vmax.f32 %v179, %v182
        %v184 = vadd.f32 %v180, %v182
        %s185 = scalar_lea.vmem %s145, 6 [#allocation4]
        %v186 = vld [vmem:[%s185] sm:$0x3]
        %v187 = vmax.f32 %v183, %v186
        %v188 = vadd.f32 %v184, %v186
        %189 = vst [vmem:[#allocation2] sm:$0x3] %v187
        %190 = vst [vmem:[#allocation3] sm:$0x3] %v188
        // Predicated region
        $region33: #{tpu_custom_call.1} parent=23 // pred_check
          %p191 = pneg %p166
        $region34: #{tpu_custom_call.1} parent=23 // pred_check_branch
          %193 = sbr.rel (%p191) target = $region36
        $region35: #{tpu_custom_call.1} parent=23 // pred_region
          %v194 = vld [vmem:[#allocation2] sm:$0x3]
          %195 = vst [vmem:[%s164] sm:$0x3] %v194
          %v196 = vld [vmem:[#allocation3] sm:$0x3]
          %v197 = vmul.f32 %v196, 0.25
          %s198 = scalar_lea.vmem %s164, 2 [#allocation7]
          %199 = vst [vmem:[%s198] sm:$0x3] %v197
        $region36: #{tpu_custom_call.1} parent=23 // pred_fallthru
          _
        %s200 = sand.u32 %s77, 1
        %s201 = scalar_lea.sflag [#allocation6], %s200
        %s202 = sand.u32 %s77, 1
        %s203 = smul.addr %s202, 4
        %s204 = scalar_lea.vmem [#allocation7], %s203
        // Predicated region
        $region37: #{tpu_custom_call.1} parent=23 // pred_check
          %p205 = pneg %p87
        $region38: #{tpu_custom_call.1} parent=23 // pred_check_branch
          %207 = sbr.rel (%p205) target = $region40
        $region39: #{tpu_custom_call.1} parent=23 // pred_region
          %209 = vsyncadd %s201, 0
          %s210 = smul.addr %s23, 2
          %s211 = sadd.s32 %s24, %s210
          %s212 = smul.addr %s211, 2
          %s213 = scalar_lea.hbm %s1, %s212
          %s214 = sshll.u32 %s204, 4
          %s215 = int_to_ptr.vmem [resolvable:$true] %s214
          %s216 = sshll.u32 %s213, 4
          %s217 = int_to_ptr.hbm [resolvable:$true] %s216
          %222 = dma.vmem_to_hbm [thread:$0]  %s215, 64, %s217, %s201, 32, 32, 2
        $region40: #{tpu_custom_call.1} parent=23 // pred_fallthru
          _
      $region24: #{tpu_custom_call.1} parent=5 // pred_fallthru
        _
      %p223 = scmp.le.s32.totalorder 2, %s13
      // Predicated region
      $region41: #{tpu_custom_call.1} parent=5 // pred_check
        %p224 = pneg %p223
      $region42: #{tpu_custom_call.1} parent=5 // pred_check_branch
        %226 = sbr.rel (%p224) target = $region44
      $region43: #{tpu_custom_call.1} parent=5 // pred_region
        %s227 = ssub.s32 %s13, 2
        // Predicated region
        $region45: #{tpu_custom_call.1} parent=43 // pred_check
          %p228 = pneg %p93
        $region46: #{tpu_custom_call.1} parent=43 // pred_check_branch
          %230 = sbr.rel (%p228) target = $region48
        $region47: #{tpu_custom_call.1} parent=43 // pred_region
          %s231 = sand.u32 %s78, 1
          %s232 = scalar_lea.sflag [#allocation6], %s231
          %s233 = sand.u32 %s78, 1
          %s234 = smul.addr %s233, 4
          %s235 = scalar_lea.vmem [#allocation7], %s234
          %237 = dma.done %s232, 64
        $region48: #{tpu_custom_call.1} parent=43 // pred_fallthru
          _
      $region44: #{tpu_custom_call.1} parent=5 // pred_fallthru
        _
    $region6: #{tpu_custom_call.1} parent=1 // loop_footer
      %s17 = sadd.s32 1, %s13
    $region7: #{tpu_custom_call.1} parent=1 // loop_footer_branch
      %12 = sbr.rel target = $region3
    $region8: #{tpu_custom_call.1} parent=1 // loop_exit
      _
    %238 = vsyncpa [#allocation5], 1
    %s239 = scalar_lea.sflag [#allocation5], 1
    %240 = vsyncpa %s239, 1
    %241 = vsyncpa [#allocation6], 1
    %s242 = scalar_lea.sflag [#allocation6], 1
    %243 = vsyncpa %s242, 1

</llo_original>
